<compile_context>
chip_gen: v7x
topology: tpu7x:2x2x1
jax: 0.10.0
libtpu: 0.0.40
codegen_flags: <defaults>
</compile_context>

<pallas_src>
import functools
import jax
import jax.numpy as jnp
from jax.experimental import pallas as pl
from jax.experimental.pallas import tpu as pltpu

LRELU_SLOPE = 0.2
IN_EPS = 1e-5  # PyTorch InstanceNorm2d default eps (affine=False -> no params)


# --------------------------- VMEM / tile policy ------------------------------
def _vmem_capacity_bytes():
    try:
        return int(pltpu.get_tpu_info().vmem_capacity_bytes)
    except Exception:
        return 64 * 2**20  # v7x-safe fallback


_VMEM_CAP = _vmem_capacity_bytes()
_BIG_VMEM = _VMEM_CAP >= 100 * 2**20                  # v5e / v6e (128 MiB)
_VMEM_MAX_LIMIT = min((_VMEM_CAP * 5) // 8, 96 * 2**20)  # ~40 MiB v7x, ~80 MiB v5e/v6e
_MAX_TM = 1024 if _BIG_VMEM else 512
_MAX_TK = 2048 if _BIG_VMEM else 1024


def _vmem_limit(tile_bytes):
    return int(min(max(tile_bytes * 2, 16 * 2**20), _VMEM_MAX_LIMIT))


def _pick_divisor_tile(dim, max_tile):
    """Largest power-of-two tile <= max_tile that exactly divides dim."""
    t = max_tile
    while t >= 8:
        if dim % t == 0:
            return t
        t //= 2
    return dim  # fallback: one full block (small dims / no nice divisor)


# ------------------------------- im2col --------------------------------------
def _im2col(x, k, stride, pad):
    # x: (N, H, W, C) -> patches (N, Ho*Wo, k*k*C), tap order (kh, kw, c).
    N, H, W, C = x.shape
    xp = jnp.pad(x, ((0, 0), (pad, pad), (pad, pad), (0, 0)))
    Ho = (H + 2 * pad - k) // stride + 1
    Wo = (W + 2 * pad - k) // stride + 1
    cols = []
    for i in range(k):
        for j in range(k):
            cols.append(xp[:, i:i + stride * Ho:stride,
                           j:j + stride * Wo:stride, :])
    p = jnp.stack(cols, axis=3)                       # (N, Ho, Wo, k*k, C)
    return p.reshape(N, Ho * Wo, k * k * C), Ho, Wo


# ---------------------- conv GEMM kernel (bias [+LReLU] [+stats]) ------------
def _conv_kernel(p_ref, w_ref, b_ref, y_ref, *rest, emit_stats, apply_lrelu):
    # p_ref: (tm, tk) bf16   w_ref: (tk, Cout) bf16   b_ref: (1, Cout) f32
    # y_ref: (tm, Cout) bf16   [s1_ref, s2_ref: (1, Cout) f32]   acc: (tm, Cout) f32
    if emit_stats:
        s1_ref, s2_ref, acc_ref = rest
    else:
        (acc_ref,) = rest
    k = pl.program_id(2)

    @pl.when(k == 0)
    def _():
        acc_ref[...] = jnp.zeros_like(acc_ref)

    acc_ref[...] += jnp.dot(p_ref[...], w_ref[...],
                            preferred_element_type=jnp.float32)

    @pl.when(k == pl.num_programs(2) - 1)
    def _():
        y = acc_ref[...] + b_ref[...]                 # (tm, Cout) f32
        if apply_lrelu:
            y = jnp.maximum(y, LRELU_SLOPE * y)
        y_ref[...] = y.astype(y_ref.dtype)
        if emit_stats:
            # Per-M-tile partial InstanceNorm statistics (f32, from the acc).
            s1_ref[...] = jnp.sum(y, axis=0, keepdims=True)
            s2_ref[...] = jnp.sum(y * y, axis=0, keepdims=True)


def conv_gemm(x, w, b, *, stride, pad, emit_stats, apply_lrelu):
    # x: (N, H, W, Cin) bf16; w: (Cout, Cin, KH, KW) PyTorch layout; b: (Cout,)
    N = x.shape[0]
    Cout, Cin, KH, KW = w.shape
    patches, Ho, Wo = _im2col(x, KH, stride, pad)
    M, Kd = Ho * Wo, KH * KW * Cin
    # (Cout,Cin,KH,KW) -> (KH,KW,Cin,Cout) -> (Kd,Cout): matches im2col order.
    w_mat = jnp.transpose(w, (2, 3, 1, 0)).reshape(Kd, Cout).astype(jnp.bfloat16)
    b_mat = b.reshape(1, Cout).astype(jnp.float32)
    patches = patches.astype(jnp.bfloat16)

    tm = _pick_divisor_tile(M, _MAX_TM)
    tk = _pick_divisor_tile(Kd, _MAX_TK)
    nm, nk = M // tm, Kd // tk
    assert M % tm == 0 and Kd % tk == 0

    tile_bytes = (2 * (tm * tk * 2 + tk * Cout * 2 + Cout * 4 + tm * Cout * 2)
                  + tm * Cout * 4)

    out_shapes = [jax.ShapeDtypeStruct((N, M, Cout), jnp.bfloat16)]
    out_specs = [pl.BlockSpec((None, tm, Cout), lambda n, m, k: (n, m, 0))]
    if emit_stats:
        out_shapes += [jax.ShapeDtypeStruct((N, nm, Cout), jnp.float32)] * 2
        out_specs += [pl.BlockSpec((None, 1, Cout), lambda n, m, k: (n, m, 0))] * 2

    kern = functools.partial(_conv_kernel, emit_stats=emit_stats,
                             apply_lrelu=apply_lrelu)
    outs = pl.pallas_call(
        kern,
        out_shape=tuple(out_shapes) if emit_stats else out_shapes[0],
        grid_spec=pltpu.PrefetchScalarGridSpec(
            num_scalar_prefetch=0,
            grid=(N, nm, nk),
            in_specs=[
                pl.BlockSpec((None, tm, tk), lambda n, m, k: (n, m, k)),
                pl.BlockSpec((tk, Cout), lambda n, m, k: (k, 0)),
                pl.BlockSpec((1, Cout), lambda n, m, k: (0, 0)),
            ],
            out_specs=tuple(out_specs) if emit_stats else out_specs[0],
            scratch_shapes=[pltpu.VMEM((tm, Cout), jnp.float32)],
        ),
        compiler_params=pltpu.CompilerParams(
            dimension_semantics=("parallel", "parallel", "arbitrary"),
            vmem_limit_bytes=_vmem_limit(tile_bytes),
        ),
    )(patches, w_mat, b_mat)

    if emit_stats:
        y, s1, s2 = outs
        return y, s1, s2, Ho, Wo
    return outs, None, None, Ho, Wo


# ----------------- InstanceNorm + LeakyReLU (second pass, M-tiled) -----------
def _inorm_lrelu_kernel(y_ref, s1_ref, s2_ref, o_ref, *, inv_m):
    # y_ref/o_ref: (tm, Cout)   s1_ref/s2_ref: (nm, Cout) partial stats (tiny).
    s1 = jnp.sum(s1_ref[...], axis=0, keepdims=True)          # (1, Cout)
    s2 = jnp.sum(s2_ref[...], axis=0, keepdims=True)
    mean = s1 * inv_m
    var = jnp.maximum(s2 * inv_m - mean * mean, 0.0)           # clamp cancellation
    inv_std = jax.lax.rsqrt(var + IN_EPS)
    y = (y_ref[...].astype(jnp.float32) - mean) * inv_std
    y = jnp.maximum(y, LRELU_SLOPE * y)
    o_ref[...] = y.astype(o_ref.dtype)


def instance_norm_lrelu(y, s1, s2):
    # y: (N, M, Cout) bf16; s1/s2: (N, nm_stats, Cout) f32 partial sums.
    N, M, Cout = y.shape
    nm_stats = s1.shape[1]
    tm = _pick_divisor_tile(M, _MAX_TM)
    nm = M // tm
    tile_bytes = 2 * (2 * tm * Cout * 2 + 2 * nm_stats * Cout * 4)

    return pl.pallas_call(
        functools.partial(_inorm_lrelu_kernel, inv_m=1.0 / M),
        out_shape=jax.ShapeDtypeStruct((N, M, Cout), jnp.bfloat16),
        grid_spec=pltpu.PrefetchScalarGridSpec(
            num_scalar_prefetch=0,
            grid=(N, nm),
            in_specs=[
                pl.BlockSpec((None, tm, Cout), lambda n, m: (n, m, 0)),
                pl.BlockSpec((None, nm_stats, Cout), lambda n, m: (n, 0, 0)),
                pl.BlockSpec((None, nm_stats, Cout), lambda n, m: (n, 0, 0)),
            ],
            out_specs=pl.BlockSpec((None, tm, Cout), lambda n, m: (n, m, 0)),
        ),
        compiler_params=pltpu.CompilerParams(
            dimension_semantics=("parallel", "parallel"),
            vmem_limit_bytes=_vmem_limit(tile_bytes),
        ),
    )(y, s1, s2)


# -------- final conv (Cout=1) + global avg-pool from the RAW activation ------
def _final_pool_kernel(x_ref, w_ref, b_ref, o_ref, *, ho, wo, kh_taps, kw_taps,
                       inv_m):
    # x_ref: (Hp, Wp, C) bf16   w_ref: (KH*KW, C) f32   b_ref/o_ref: (1, 1) f32
    x = x_ref[...].astype(jnp.float32)
    c = x.shape[-1]
    acc = jnp.zeros((1, c), jnp.float32)
    for kh in range(kh_taps):
        for kw in range(kw_taps):
            win = x[kh:kh + ho, kw:kw + wo, :]                 # static slice
            s = jnp.sum(jnp.sum(win, axis=0), axis=0)          # (C,)  XLU
            acc = acc + s[None, :] * w_ref[kh * kw_taps + kw, :][None, :]
    val = jnp.sum(acc, axis=1, keepdims=True) * inv_m + b_ref[...]
    o_ref[...] = val


def final_conv_pool(x, w, b, *, pad):
    # avg_pool(conv(x), full) == (1/M) * sum_{kh,kw,c} w[kh,kw,c] *
    #                            (windowed spatial sum of x_pad)  + b
    N, Hi, Wi, Cin = x.shape
    Cout, _, KH, KW = w.shape
    assert Cout == 1
    Ho = Hi + 2 * pad - KH + 1
    Wo = Wi + 2 * pad - KW + 1
    Hp, Wp = Hi + 2 * pad, Wi + 2 * pad
    xp = jnp.pad(x, ((0, 0), (pad, pad), (pad, pad), (0, 0)))
    # (1,Cin,KH,KW) -> (KH,KW,Cin) -> (KH*KW, Cin), tap order (kh, kw).
    w_taps = jnp.transpose(w[0], (1, 2, 0)).reshape(KH * KW, Cin).astype(jnp.float32)
    b_mat = b.reshape(1, 1).astype(jnp.float32)

    tile_bytes = 2 * (Hp * Wp * Cin * 2 + KH * KW * Cin * 4 + 4) + 4
    out = pl.pallas_call(
        functools.partial(_final_pool_kernel, ho=Ho, wo=Wo, kh_taps=KH,
                          kw_taps=KW, inv_m=1.0 / (Ho * Wo)),
        out_shape=jax.ShapeDtypeStruct((N, 1, 1), jnp.float32),
        grid_spec=pltpu.PrefetchScalarGridSpec(
            num_scalar_prefetch=0,
            grid=(N,),
            in_specs=[
                pl.BlockSpec((None, Hp, Wp, Cin), lambda n: (n, 0, 0, 0)),
                pl.BlockSpec((KH * KW, Cin), lambda n: (0, 0)),
                pl.BlockSpec((1, 1), lambda n: (0, 0)),
            ],
            out_specs=pl.BlockSpec((None, 1, 1), lambda n: (n, 0, 0)),
        ),
        compiler_params=pltpu.CompilerParams(
            dimension_semantics=("parallel",),
            vmem_limit_bytes=_vmem_limit(tile_bytes),
        ),
    )(xp, w_taps, b_mat)
    return out.reshape(N, 1)


# ----------------------------- model ----------------------------------------
def init_params(key, input_nc=3):
    # Reproduces weights_init: conv weights ~ N(0, 0.02); conv biases keep
    # PyTorch's default uniform init; InstanceNorm2d has no params (affine=False).
    specs = [
        (64, input_nc, 4, 4),
        (128, 64, 4, 4),
        (256, 128, 4, 4),
        (512, 256, 4, 4),
        (1, 512, 4, 4),
    ]
    params = []
    for i, s in enumerate(specs):
        kw, kb = jax.random.split(jax.random.fold_in(key, i))
        w = 0.02 * jax.random.normal(kw, s, dtype=jnp.float32)
        bound = 1.0 / float(s[1] * s[2] * s[3]) ** 0.5
        b = jax.random.uniform(kb, (s[0],), jnp.float32, -bound, bound)
        params.append((w, b))
    return params


def discriminator_forward(x_nchw, params):
    # Matches Discriminator(input_nc=3, use_bce=0).forward.
    x = jnp.transpose(x_nchw, (0, 2, 3, 1)).astype(jnp.bfloat16)  # NCHW -> NHWC
    (w1, b1), (w2, b2), (w3, b3), (w4, b4), (w5, b5) = params
    # Zero-pad input channels 3 -> 4 (padded channels & weight columns are zero
    # -> identical result, better-aligned layer-1 patch loads, Kd = 64).
    cin = x.shape[-1]
    cpad = (-cin) % 4
    if cpad:
        x = jnp.pad(x, ((0, 0), (0, 0), (0, 0), (0, cpad)))
        w1 = jnp.pad(w1, ((0, 0), (0, cpad), (0, 0), (0, 0)))

    # Layer 1: conv + LeakyReLU (no norm), fused in the GEMM finalize.
    y, _, _, Ho, Wo = conv_gemm(x, w1, b1, stride=2, pad=1,
                                emit_stats=False, apply_lrelu=True)
    x = y.reshape(y.shape[0], Ho, Wo, -1)

    # Layers 2-4: conv (+bias, partial IN stats) then InstanceNorm + LeakyReLU.
    for (w, b, s) in ((w2, b2, 2), (w3, b3, 2), (w4, b4, 1)):
        y, s1, s2, Ho, Wo = conv_gemm(x, w, b, stride=s, pad=1,
                                      emit_stats=True, apply_lrelu=False)
        y = instance_norm_lrelu(y, s1, s2)
        x = y.reshape(y.shape[0], Ho, Wo, -1)

    # Layer 5: conv (Cout=1, no norm/activation, use_bce=0 -> no sigmoid)
    # + global average pool + view(N, -1), as an in-kernel tap reduction.
    return final_conv_pool(x, w5, b5, pad=1)                      # (N, 1) f32


if __name__ == "__main__":
    key = jax.random.PRNGKey(0)
    kx, kp = jax.random.split(key)
    # Smallest spatial size keeping all 5 convs valid:
    # 32 -> 16 -> 8 -> 4 -> 3 -> 2 -> global-pool 1.
    x = jax.random.normal(kx, (2, 3, 32, 32), dtype=jnp.float32)   # NCHW input
    params = init_params(kp, input_nc=3)
    y = discriminator_forward(x, params)
    y = jax.block_until_ready(y)
    assert y.shape == (2, 1) and y.dtype == jnp.float32
    assert bool(jnp.all(jnp.isfinite(y)))
    print("KERNEL_OK")
</pallas_src>

<mosaic_0001>
module attributes {stable_mosaic.version = 11 : i64} {
  func.func @_conv_kernel(%arg0: i32, %arg1: i32, %arg2: i32, %arg3: memref<1x256x64xbf16, #tpu.memory_space<vmem>>, %arg4: memref<64x64xbf16, #tpu.memory_space<vmem>>, %arg5: memref<1x64xf32, #tpu.memory_space<vmem>>, %arg6: memref<1x256x64xbf16, #tpu.memory_space<vmem>>, %arg7: memref<256x64xf32, #tpu.memory_space<vmem>>) attributes {dimension_semantics = [#tpu.dimension_semantics<parallel>, #tpu.dimension_semantics<parallel>, #tpu.dimension_semantics<arbitrary>], iteration_bounds = array<i64: 2, 1, 1>, scalar_prefetch = 0 : i64, scratch_operands = 1 : i64, tpu.core_type = #tpu.core_type<tc>, window_params = [{transform_indices = @transform_0, window_bounds = array<i64: 1, 256, 64>}, {transform_indices = @transform_1, window_bounds = array<i64: 64, 64>}, {pipeline_mode = #tpu.pipeline_mode<synchronous>, transform_indices = @transform_2, window_bounds = array<i64: 1, 64>}, {transform_indices = @transform_3, window_bounds = array<i64: 1, 256, 64>}]} {
    %c0_i32 = arith.constant 0 : i32
    %0 = arith.cmpi eq, %arg2, %c0_i32 : i32
    %1 = arith.extui %0 : i1 to i32
    %c0_i32_0 = arith.constant 0 : i32
    %2 = arith.cmpi ne, %1, %c0_i32_0 : i32
    scf.if %2 {
      %cst_11 = arith.constant 0.000000e+00 : f32
      %13 = vector.broadcast %cst_11 : f32 to vector<256x64xf32>
      %c0_12 = arith.constant 0 : index
      %c0_13 = arith.constant 0 : index
      %14 = vector.load %arg7[%c0_12, %c0_13] : memref<256x64xf32, #tpu.memory_space<vmem>>, vector<256x64xf32>
      tpu.vector_store %arg7[%c0_12, %c0_13], %13 {strides = array<i32>} : memref<256x64xf32, #tpu.memory_space<vmem>>, vector<256x64xf32>,
    } else {
    }
    %c0 = arith.constant 0 : index
    %c0_1 = arith.constant 0 : index
    %3 = vector.load %arg7[%c0, %c0_1] : memref<256x64xf32, #tpu.memory_space<vmem>>, vector<256x64xf32>
    %c0_2 = arith.constant 0 : index
    %c0_3 = arith.constant 0 : index
    %c0_4 = arith.constant 0 : index
    %4 = vector.load %arg3[%c0_2, %c0_3, %c0_4] : memref<1x256x64xbf16, #tpu.memory_space<vmem>>, vector<1x256x64xbf16>
    %5 = vector.shape_cast %4 : vector<1x256x64xbf16> to vector<256x64xbf16>
    %c0_5 = arith.constant 0 : index
    %c0_6 = arith.constant 0 : index
    %6 = vector.load %arg4[%c0_5, %c0_6] : memref<64x64xbf16, #tpu.memory_space<vmem>>, vector<64x64xbf16>
    %cst = arith.constant dense<0.000000e+00> : vector<256x64xf32>
    %7 = tpu.matmul %5, %6, %cst {dimension_numbers = #tpu.dot_dimension_numbers<[1], [0], [0], [1], [0, 0, 1, 1], [], []>} : vector<256x64xbf16>, vector<64x64xbf16>, vector<256x64xf32> -> vector<256x64xf32>
    %8 = arith.addf %3, %7 : vector<256x64xf32>
    %c0_7 = arith.constant 0 : index
    %c0_8 = arith.constant 0 : index
    %9 = vector.load %arg7[%c0_7, %c0_8] : memref<256x64xf32, #tpu.memory_space<vmem>>, vector<256x64xf32>
    tpu.vector_store %arg7[%c0_7, %c0_8], %8 {strides = array<i32>} : memref<256x64xf32, #tpu.memory_space<vmem>>, vector<256x64xf32>,
    %c0_i32_9 = arith.constant 0 : i32
    %10 = arith.cmpi eq, %arg2, %c0_i32_9 : i32
    %11 = arith.extui %10 : i1 to i32
    %c0_i32_10 = arith.constant 0 : i32
    %12 = arith.cmpi ne, %11, %c0_i32_10 : i32
    scf.if %12 {
      %c0_11 = arith.constant 0 : index
      %c0_12 = arith.constant 0 : index
      %13 = vector.load %arg7[%c0_11, %c0_12] : memref<256x64xf32, #tpu.memory_space<vmem>>, vector<256x64xf32>
      %c0_13 = arith.constant 0 : index
      %c0_14 = arith.constant 0 : index
      %14 = vector.load %arg5[%c0_13, %c0_14] : memref<1x64xf32, #tpu.memory_space<vmem>>, vector<1x64xf32>
      %15 = vector.broadcast %14 : vector<1x64xf32> to vector<256x64xf32>
      %16 = arith.addf %13, %15 : vector<256x64xf32>
      %cst_15 = arith.constant 2.000000e-01 : f32
      %17 = vector.broadcast %cst_15 : f32 to vector<256x64xf32>
      %18 = arith.mulf %17, %16 : vector<256x64xf32>
      %19 = arith.maximumf %16, %18 : vector<256x64xf32>
      %20 = arith.truncf %19 : vector<256x64xf32> to vector<256x64xbf16>
      %c0_16 = arith.constant 0 : index
      %c0_17 = arith.constant 0 : index
      %c0_18 = arith.constant 0 : index
      %21 = vector.load %arg6[%c0_16, %c0_17, %c0_18] : memref<1x256x64xbf16, #tpu.memory_space<vmem>>, vector<1x256x64xbf16>
      %22 = vector.shape_cast %21 : vector<1x256x64xbf16> to vector<256x64xbf16>
      %23 = vector.shape_cast %20 : vector<256x64xbf16> to vector<1x256x64xbf16>
      tpu.vector_store %arg6[%c0_16, %c0_17, %c0_18], %23 {strides = array<i32>} : memref<1x256x64xbf16, #tpu.memory_space<vmem>>, vector<1x256x64xbf16>,
    } else {
    }
    return
  }
  func.func @transform_0(%arg0: i32, %arg1: i32, %arg2: i32) -> (i32, i32, i32) {
    %c0_i32 = arith.constant 0 : i32
    return %arg0, %arg1, %arg2 : i32, i32, i32
  }
  func.func @transform_1(%arg0: i32, %arg1: i32, %arg2: i32) -> (i32, i32) {
    %c0_i32 = arith.constant 0 : i32
    %c0_i32_0 = arith.constant 0 : i32
    return %arg2, %c0_i32 : i32, i32
  }
  func.func @transform_2(%arg0: i32, %arg1: i32, %arg2: i32) -> (i32, i32) {
    %c0_i32 = arith.constant 0 : i32
    %c0_i32_0 = arith.constant 0 : i32
    %c0_i32_1 = arith.constant 0 : i32
    return %c0_i32, %c0_i32_0 : i32, i32
  }
  func.func @transform_3(%arg0: i32, %arg1: i32, %arg2: i32) -> (i32, i32, i32) {
    %c0_i32 = arith.constant 0 : i32
    %c0_i32_0 = arith.constant 0 : i32
    return %arg0, %arg1, %c0_i32 : i32, i32, i32
  }
}

</mosaic_0001>

<llo_original>
// kernel: tpu_custom_call.1
$region0: #{tpu_custom_call.1}
  #allocation0 [shape = 'u32[]', space=smem, size = 0x4, offset = 0x4, fixed_abs, tag = 'smem constant byte address 0x4 - core index']
  #allocation1 [shape = 'u32[144,128]{1,0:T(1,128)}', space=vmem, size = 0x12000, scoped, tag = 'internal scratch']
  #allocation2 [shape = 'f32[256,64]{1,0:T(8,128)}', space=vmem, size = 0x20000, scoped, tag = 'scratch operand']
  %s0 = inlined_call_operand.vmem [shape: bf16[2,256,64], index: 0, kind: input, shape index: {}]
  %s1 = inlined_call_operand.vmem [shape: bf16[64,64], index: 1, kind: input, shape index: {}]
  %s2 = inlined_call_operand.vmem [shape: f32[1,64], index: 2, kind: input, shape index: {}]
  %s3 = inlined_call_operand.vmem [shape: bf16[2,256,64], index: 3, kind: output, shape index: {}]
  %s4 = sld [smem:[#allocation0]]
  $region53: #{tpu_custom_call.1} parent=0
    _
  %s6 = ssub.s32 1, %s4
  %s7 = scalar_select 0, %s6, %s4
  loop: start=0, step=1, limit=4
  $region2: #{tpu_custom_call.1} parent=0 // loop_pre_header
    _
  $region3: #{tpu_custom_call.1} parent=0 // loop_header
    %s9 = sphi 0, %s13
    %p10 = scmp.ge.s32.totalorder %s9, 4
    %s16 = sphi 0, %s35
    %s17 = sphi 0, %s31
    %s18 = sphi 0, %s27
    %s19 = sphi 0, %s16
    %s20 = sphi 0, %s17
    %s21 = sphi 0, %s18
    %s22 = sphi 0, %s19
    %s23 = sphi 0, %s20
    %s24 = sphi 0, %s21
    %s42 = sphi 0, %s44
    %s45 = sphi 0, %s42
    %s46 = sphi 0, %s45
    %s62 = sphi 0, %s46
    %s68 = sphi 0, %s70
    %s71 = sphi 0, %s68
    %s72 = sphi 0, %s71
    %s88 = sphi 0, %s72
    %s92 = sphi 0, %s92
    %s94 = sphi 0, %s92
    %s95 = sphi 0, %s94
    %s109 = sphi 0, %s95
    %s117 = sphi 0, %s119
    %s120 = sphi 0, %s117
    %s121 = sphi 0, %s120
    %s137 = sphi 0, %s121
  $region4: #{tpu_custom_call.1} parent=0 // loop_header_branch
    %12 = sbr.rel (%p10) target = $region8
  $region5: #{tpu_custom_call.1} parent=0 // loop_body
    %s14 = ssub.s32 %s9, 1
    %s15 = ssub.s32 %s9, 2
    %s25 = sadd.s32 1, %s18
    %p26 = scmp.ge.s32.totalorder %s25, 1
    %s27 = scalar_select %p26, 0, %s25
    %s28 = sadd.s32 1, %s17
    %s29 = scalar_select %p26, %s28, %s17
    %p30 = scmp.ge.s32.totalorder %s29, 1
    %s31 = scalar_select %p30, 0, %s29
    %s32 = sadd.s32 1, %s16
    %s33 = scalar_select %p30, %s32, %s16
    %p34 = scmp.ge.s32.totalorder %s33, 2
    %s35 = scalar_select %p34, 0, %s33
    %s36 = ssub.s32 %s16, %s35
    %s37 = ssub.s32 %s17, %s31
    %s38 = sor.u32 %s36, %s37
    %s39 = ssub.s32 %s18, %s27
    %s40 = sor.u32 %s38, %s39
    %p41 = scmp.eq.s32.totalorder %s40, 0
    %s43 = sadd.s32 %s42, 1
    %s44 = scalar_select %p41, %s42, %s43
    %p47 = pneg %p41
    %p48 = scmp.eq.s32.totalorder %s9, 1
    %p49 = por %p47, %p48
    %p50 = scmp.ne.s32.totalorder %s42, %s45
    %p51 = scmp.eq.s32.totalorder %s9, 0
    %p52 = por %p50, %p51
    %p53 = scmp.ne.s32.totalorder %s42, %s45
    %p54 = scmp.eq.s32.totalorder %s14, 1
    %p55 = por %p53, %p54
    %p56 = scmp.ne.s32.totalorder %s45, %s46
    %p57 = scmp.eq.s32.totalorder %s14, 0
    %p58 = por %p56, %p57
    %p59 = scmp.ne.s32.totalorder %s45, %s46
    %p60 = scmp.eq.s32.totalorder %s15, 1
    %p61 = por %p59, %p60
    %p63 = scmp.ne.s32.totalorder %s46, %s62
    %p64 = scmp.eq.s32.totalorder %s15, 0
    %p65 = por %p63, %p64
    %s66 = ssub.s32 %s18, %s27
    %p67 = scmp.eq.s32.totalorder %s66, 0
    %s69 = sadd.s32 %s68, 1
    %s70 = scalar_select %p67, %s68, %s69
    %p73 = pneg %p67
    %p74 = scmp.eq.s32.totalorder %s9, 1
    %p75 = por %p73, %p74
    %p76 = scmp.ne.s32.totalorder %s68, %s71
    %p77 = scmp.eq.s32.totalorder %s9, 0
    %p78 = por %p76, %p77
    %p79 = scmp.ne.s32.totalorder %s68, %s71
    %p80 = scmp.eq.s32.totalorder %s14, 1
    %p81 = por %p79, %p80
    %p82 = scmp.ne.s32.totalorder %s71, %s72
    %p83 = scmp.eq.s32.totalorder %s14, 0
    %p84 = por %p82, %p83
    %p85 = scmp.ne.s32.totalorder %s71, %s72
    %p86 = scmp.eq.s32.totalorder %s15, 1
    %p87 = por %p85, %p86
    %p89 = scmp.ne.s32.totalorder %s72, %s88
    %p90 = scmp.eq.s32.totalorder %s15, 0
    %p91 = por %p89, %p90
    %s93 = sadd.s32 %s92, 1
    %p96 = scmp.eq.s32.totalorder %s9, 1
    %p97 = scmp.ne.s32.totalorder %s92, %s94
    %p98 = scmp.eq.s32.totalorder %s9, 0
    %p99 = por %p97, %p98
    %p100 = scmp.ne.s32.totalorder %s92, %s94
    %p101 = scmp.eq.s32.totalorder %s14, 1
    %p102 = por %p100, %p101
    %p103 = scmp.ne.s32.totalorder %s94, %s95
    %p104 = scmp.eq.s32.totalorder %s14, 0
    %p105 = por %p103, %p104
    %p106 = scmp.ne.s32.totalorder %s94, %s95
    %p107 = scmp.eq.s32.totalorder %s15, 1
    %p108 = por %p106, %p107
    %p110 = scmp.ne.s32.totalorder %s95, %s109
    %p111 = scmp.eq.s32.totalorder %s15, 0
    %p112 = por %p110, %p111
    %s113 = ssub.s32 %s16, %s35
    %s114 = ssub.s32 %s17, %s31
    %s115 = sor.u32 %s113, %s114
    %p116 = scmp.eq.s32.totalorder %s115, 0
    %s118 = sadd.s32 %s117, 1
    %s119 = scalar_select %p116, %s117, %s118
    %p122 = pneg %p116
    %p123 = scmp.eq.s32.totalorder %s9, 1
    %p124 = por %p122, %p123
    %p125 = scmp.ne.s32.totalorder %s117, %s120
    %p126 = scmp.eq.s32.totalorder %s9, 0
    %p127 = por %p125, %p126
    %p128 = scmp.ne.s32.totalorder %s117, %s120
    %p129 = scmp.eq.s32.totalorder %s14, 1
    %p130 = por %p128, %p129
    %p131 = scmp.ne.s32.totalorder %s120, %s121
    %p132 = scmp.eq.s32.totalorder %s14, 0
    %p133 = por %p131, %p132
    %p134 = scmp.ne.s32.totalorder %s120, %s121
    %p135 = scmp.eq.s32.totalorder %s15, 1
    %p136 = por %p134, %p135
    %p138 = scmp.ne.s32.totalorder %s121, %s137
    %p139 = scmp.eq.s32.totalorder %s15, 0
    %p140 = por %p138, %p139
    %p141 = scmp.le.s32.totalorder 1, %s9
    %p142 = scmp.lt.s32.totalorder %s9, 3
    %p143 = pnand %p141, %p142
    %p144 = pneg %p143
    // Predicated region
    $region9: #{tpu_custom_call.1} parent=5 // pred_check
      _
    $region10: #{tpu_custom_call.1} parent=5 // pred_check_branch
      %146 = sbr.rel (%p143) target = $region12
    $region11: #{tpu_custom_call.1} parent=5 // pred_region
      %s147 = ssub.s32 %s9, 1
      // Predicated region
      $region13: #{tpu_custom_call.1} parent=11 // pred_check
        %p148 = pneg %p84
      $region14: #{tpu_custom_call.1} parent=11 // pred_check_branch
        %150 = sbr.rel (%p148) target = $region16
      $region15: #{tpu_custom_call.1} parent=11 // pred_region
        %s151 = smul.u32 8, %s21
        %p152 = scmp.lt.s32.totalorder %s151, 7
        %s153 = scalar_select %p152, %s151, 7
        %s154 = smul.addr %s153, 4
        %s155 = scalar_lea.vmem %s1, %s154
        %s156 = smul.u32 8, %s21
      $region16: #{tpu_custom_call.1} parent=11 // pred_fallthru
        _
      // Predicated region
      $region17: #{tpu_custom_call.1} parent=11 // pred_check
        %p157 = pneg %p105
      $region18: #{tpu_custom_call.1} parent=11 // pred_check_branch
        %159 = sbr.rel (%p157) target = $region20
      $region19: #{tpu_custom_call.1} parent=11 // pred_region
        _
      $region20: #{tpu_custom_call.1} parent=11 // pred_fallthru
        _
    $region12: #{tpu_custom_call.1} parent=5 // pred_fallthru
      _
    %p160 = scmp.lt.s32.totalorder %s9, 2
    // Predicated region
    $region21: #{tpu_custom_call.1} parent=5 // pred_check
      %p161 = pneg %p160
    $region22: #{tpu_custom_call.1} parent=5 // pred_check_branch
      %163 = sbr.rel (%p161) target = $region24
    $region23: #{tpu_custom_call.1} parent=5 // pred_region
      // Predicated region
      $region25: #{tpu_custom_call.1} parent=23 // pred_check
        %p164 = pneg %p52
      $region26: #{tpu_custom_call.1} parent=23 // pred_check_branch
        %166 = sbr.rel (%p164) target = $region28
      $region27: #{tpu_custom_call.1} parent=23 // pred_region
        %s167 = smul.u32 32, %s17
        %p168 = scmp.lt.s32.totalorder %s16, 1
        %s169 = scalar_select %p168, %s16, 1
        %p170 = scmp.lt.s32.totalorder %s167, 31
        %s171 = scalar_select %p170, %s167, 31
        %p172 = scmp.lt.s32.totalorder %s18, 0
        %s173 = scalar_select %p172, %s18, 0
        %s174 = sadd.s32 %s173, %s171
        %s175 = smul.addr %s169, 32
        %s176 = sadd.s32 %s174, %s175
        %s177 = smul.addr %s176, 4
        %s178 = scalar_lea.vmem %s0, %s177
        %s179 = smul.u32 32, %s17
      $region28: #{tpu_custom_call.1} parent=23 // pred_fallthru
        _
    $region24: #{tpu_custom_call.1} parent=5 // pred_fallthru
      _
    %p180 = scmp.le.s32.totalorder 1, %s9
    %p181 = scmp.lt.s32.totalorder %s9, 3
    %p182 = pnand %p180, %p181
    %p183 = pneg %p182
    // Predicated region
    $region29: #{tpu_custom_call.1} parent=5 // pred_check
      _
    $region30: #{tpu_custom_call.1} parent=5 // pred_check_branch
      %185 = sbr.rel (%p182) target = $region32
    $region31: #{tpu_custom_call.1} parent=5 // pred_region
      %s186 = ssub.s32 %s9, 1
      %s187 = smul.u32 32, %s20
      %p188 = scmp.lt.s32.totalorder %s19, 1
      %s189 = scalar_select %p188, %s19, 1
      %p190 = scmp.lt.s32.totalorder %s187, 31
      %s191 = scalar_select %p190, %s187, 31
      %p192 = scmp.lt.s32.totalorder %s21, 0
      %s193 = scalar_select %p192, %s21, 0
      %s194 = sadd.s32 %s193, %s191
      %s195 = smul.addr %s189, 32
      %s196 = sadd.s32 %s194, %s195
      %s197 = smul.addr %s196, 4
      %s198 = scalar_lea.vmem %s0, %s197
      %p199 = pneg %p58
      %p200 = pneg %p55
      %s201 = smul.u32 8, %s21
      %p202 = scmp.lt.s32.totalorder %s201, 7
      %s203 = scalar_select %p202, %s201, 7
      %s204 = smul.addr %s203, 4
      %s205 = scalar_lea.vmem %s1, %s204
      %p206 = pneg %p84
      %p207 = pneg %p81
      %p208 = pneg %p105
      %p209 = pneg %p102
      %p210 = pneg %p133
      %p211 = pneg %p130
      %s212 = smul.u32 32, %s20
      %p213 = scmp.lt.s32.totalorder %s19, 1
      %s214 = scalar_select %p213, %s19, 1
      %p215 = scmp.lt.s32.totalorder %s212, 31
      %s216 = scalar_select %p215, %s212, 31
      %s217 = smul.addr %s214, 32
      %s218 = sadd.s32 %s216, %s217
      %s219 = smul.addr %s218, 4
      %s220 = scalar_lea.vmem %s3, %s219
      %s221 = smul.u32 32, %s20
      %p222 = scmp.lt.s32.totalorder %s19, 1
      %s223 = scalar_select %p222, %s19, 1
      %p224 = scmp.lt.s32.totalorder %s221, 31
      %s225 = scalar_select %p224, %s221, 31
      %p226 = scmp.lt.s32.totalorder %s21, 0
      %s227 = scalar_select %p226, %s21, 0
      %s228 = sadd.s32 %s227, %s225
      %s229 = smul.addr %s223, 32
      %s230 = sadd.s32 %s228, %s229
      %s231 = smul.addr %s230, 4
      %s232 = scalar_lea.vmem %s0, %s231
      %s233 = smul.u32 32, %s20
      %s234 = smul.u32 8, %s21
      %p235 = scmp.lt.s32.totalorder %s234, 7
      %s236 = scalar_select %p235, %s234, 7
      %s237 = smul.addr %s236, 4
      %s238 = scalar_lea.vmem %s1, %s237
      %s239 = smul.u32 8, %s21
      %s240 = smul.u32 32, %s20
      %p241 = scmp.lt.s32.totalorder %s19, 1
      %s242 = scalar_select %p241, %s19, 1
      %p243 = scmp.lt.s32.totalorder %s240, 31
      %s244 = scalar_select %p243, %s240, 31
      %s245 = smul.addr %s242, 32
      %s246 = sadd.s32 %s244, %s245
      %s247 = smul.addr %s246, 4
      %s248 = scalar_lea.vmem %s3, %s247
      %s249 = smul.u32 32, %s20
      %p251 = scmp.eq.s32.totalorder %s21, 0
      // Predicated region
      $region33: #{tpu_custom_call.1} parent=31 // pred_check
        %p252 = pneg %p251
      $region34: #{tpu_custom_call.1} parent=31 // pred_check_branch
        %254 = sbr.rel (%p252) target = $region36
      $region35: #{tpu_custom_call.1} parent=31 // pred_region
        %vm255 = vcmask 523264
        %256 = vst.msk [vmem:[#allocation2] sm:$0xff] %vm255, 0.0
        %257 = vst.msk [vmem:[#allocation2 + $0x8] sm:$0xff] %vm255, 0.0
        %258 = vst.msk [vmem:[#allocation2 + $0x10] sm:$0xff] %vm255, 0.0
        %259 = vst.msk [vmem:[#allocation2 + $0x18] sm:$0xff] %vm255, 0.0
        %260 = vst.msk [vmem:[#allocation2 + $0x20] sm:$0xff] %vm255, 0.0
        %261 = vst.msk [vmem:[#allocation2 + $0x28] sm:$0xff] %vm255, 0.0
        %262 = vst.msk [vmem:[#allocation2 + $0x30] sm:$0xff] %vm255, 0.0
        %263 = vst.msk [vmem:[#allocation2 + $0x38] sm:$0xff] %vm255, 0.0
        %264 = vst.msk [vmem:[#allocation2 + $0x40] sm:$0xff] %vm255, 0.0
        %265 = vst.msk [vmem:[#allocation2 + $0x48] sm:$0xff] %vm255, 0.0
        %266 = vst.msk [vmem:[#allocation2 + $0x50] sm:$0xff] %vm255, 0.0
        %267 = vst.msk [vmem:[#allocation2 + $0x58] sm:$0xff] %vm255, 0.0
        %268 = vst.msk [vmem:[#allocation2 + $0x60] sm:$0xff] %vm255, 0.0
        %269 = vst.msk [vmem:[#allocation2 + $0x68] sm:$0xff] %vm255, 0.0
        %270 = vst.msk [vmem:[#allocation2 + $0x70] sm:$0xff] %vm255, 0.0
        %271 = vst.msk [vmem:[#allocation2 + $0x78] sm:$0xff] %vm255, 0.0
        %272 = vst.msk [vmem:[#allocation2 + $0x80] sm:$0xff] %vm255, 0.0
        %273 = vst.msk [vmem:[#allocation2 + $0x88] sm:$0xff] %vm255, 0.0
        %274 = vst.msk [vmem:[#allocation2 + $0x90] sm:$0xff] %vm255, 0.0
        %275 = vst.msk [vmem:[#allocation2 + $0x98] sm:$0xff] %vm255, 0.0
        %276 = vst.msk [vmem:[#allocation2 + $0xa0] sm:$0xff] %vm255, 0.0
        %277 = vst.msk [vmem:[#allocation2 + $0xa8] sm:$0xff] %vm255, 0.0
        %278 = vst.msk [vmem:[#allocation2 + $0xb0] sm:$0xff] %vm255, 0.0
        %279 = vst.msk [vmem:[#allocation2 + $0xb8] sm:$0xff] %vm255, 0.0
        %280 = vst.msk [vmem:[#allocation2 + $0xc0] sm:$0xff] %vm255, 0.0
        %281 = vst.msk [vmem:[#allocation2 + $0xc8] sm:$0xff] %vm255, 0.0
        %282 = vst.msk [vmem:[#allocation2 + $0xd0] sm:$0xff] %vm255, 0.0
        %283 = vst.msk [vmem:[#allocation2 + $0xd8] sm:$0xff] %vm255, 0.0
        %284 = vst.msk [vmem:[#allocation2 + $0xe0] sm:$0xff] %vm255, 0.0
        %285 = vst.msk [vmem:[#allocation2 + $0xe8] sm:$0xff] %vm255, 0.0
        %286 = vst.msk [vmem:[#allocation2 + $0xf0] sm:$0xff] %vm255, 0.0
        %287 = vst.msk [vmem:[#allocation2 + $0xf8] sm:$0xff] %vm255, 0.0
      $region36: #{tpu_custom_call.1} parent=31 // pred_fallthru
        _
      %v288 = vld [vmem:[#allocation2] sm:$0xff]
      %v289 = vld [vmem:[#allocation2 + $0x8] sm:$0xff]
      %v290 = vld [vmem:[#allocation2 + $0x10] sm:$0xff]
      %v291 = vld [vmem:[#allocation2 + $0x18] sm:$0xff]
      %v292 = vld [vmem:[#allocation2 + $0x20] sm:$0xff]
      %v293 = vld [vmem:[#allocation2 + $0x28] sm:$0xff]
      %v294 = vld [vmem:[#allocation2 + $0x30] sm:$0xff]
      %v295 = vld [vmem:[#allocation2 + $0x38] sm:$0xff]
      %v296 = vld [vmem:[#allocation2 + $0x40] sm:$0xff]
      %v297 = vld [vmem:[#allocation2 + $0x48] sm:$0xff]
      %v298 = vld [vmem:[#allocation2 + $0x50] sm:$0xff]
      %v299 = vld [vmem:[#allocation2 + $0x58] sm:$0xff]
      %v300 = vld [vmem:[#allocation2 + $0x60] sm:$0xff]
      %v301 = vld [vmem:[#allocation2 + $0x68] sm:$0xff]
      %v302 = vld [vmem:[#allocation2 + $0x70] sm:$0xff]
      %v303 = vld [vmem:[#allocation2 + $0x78] sm:$0xff]
      %v304 = vld [vmem:[#allocation2 + $0x80] sm:$0xff]
      %v305 = vld [vmem:[#allocation2 + $0x88] sm:$0xff]
      %v306 = vld [vmem:[#allocation2 + $0x90] sm:$0xff]
      %v307 = vld [vmem:[#allocation2 + $0x98] sm:$0xff]
      %v308 = vld [vmem:[#allocation2 + $0xa0] sm:$0xff]
      %v309 = vld [vmem:[#allocation2 + $0xa8] sm:$0xff]
      %v310 = vld [vmem:[#allocation2 + $0xb0] sm:$0xff]
      %v311 = vld [vmem:[#allocation2 + $0xb8] sm:$0xff]
      %v312 = vld [vmem:[#allocation2 + $0xc0] sm:$0xff]
      %v313 = vld [vmem:[#allocation2 + $0xc8] sm:$0xff]
      %v314 = vld [vmem:[#allocation2 + $0xd0] sm:$0xff]
      %v315 = vld [vmem:[#allocation2 + $0xd8] sm:$0xff]
      %v316 = vld [vmem:[#allocation2 + $0xe0] sm:$0xff]
      %v317 = vld [vmem:[#allocation2 + $0xe8] sm:$0xff]
      %v318 = vld [vmem:[#allocation2 + $0xf0] sm:$0xff]
      %v319 = vld [vmem:[#allocation2 + $0xf8] sm:$0xff]
      %v320 = vld [vmem:[%s232] sm:$0xf]
      %v321 = vld [vmem:[%s232 + $0x4] sm:$0xf]
      %v322 = vld [vmem:[%s232 + $0x8] sm:$0xf]
      %v323 = vld [vmem:[%s232 + $0xc] sm:$0xf]
      %v324 = vld [vmem:[%s232 + $0x10] sm:$0xf]
      %v325 = vld [vmem:[%s232 + $0x14] sm:$0xf]
      %v326 = vld [vmem:[%s232 + $0x18] sm:$0xf]
      %v327 = vld [vmem:[%s232 + $0x1c] sm:$0xf]
      %v328 = vld [vmem:[%s232 + $0x20] sm:$0xf]
      %v329 = vld [vmem:[%s232 + $0x24] sm:$0xf]
      %v330 = vld [vmem:[%s232 + $0x28] sm:$0xf]
      %v331 = vld [vmem:[%s232 + $0x2c] sm:$0xf]
      %v332 = vld [vmem:[%s232 + $0x30] sm:$0xf]
      %v333 = vld [vmem:[%s232 + $0x34] sm:$0xf]
      %v334 = vld [vmem:[%s232 + $0x38] sm:$0xf]
      %v335 = vld [vmem:[%s232 + $0x3c] sm:$0xf]
      %v336 = vld [vmem:[%s232 + $0x40] sm:$0xf]
      %v337 = vld [vmem:[%s232 + $0x44] sm:$0xf]
      %v338 = vld [vmem:[%s232 + $0x48] sm:$0xf]
      %v339 = vld [vmem:[%s232 + $0x4c] sm:$0xf]
      %v340 = vld [vmem:[%s232 + $0x50] sm:$0xf]
      %v341 = vld [vmem:[%s232 + $0x54] sm:$0xf]
      %v342 = vld [vmem:[%s232 + $0x58] sm:$0xf]
      %v343 = vld [vmem:[%s232 + $0x5c] sm:$0xf]
      %v344 = vld [vmem:[%s232 + $0x60] sm:$0xf]
      %v345 = vld [vmem:[%s232 + $0x64] sm:$0xf]
      %v346 = vld [vmem:[%s232 + $0x68] sm:$0xf]
      %v347 = vld [vmem:[%s232 + $0x6c] sm:$0xf]
      %v348 = vld [vmem:[%s232 + $0x70] sm:$0xf]
      %v349 = vld [vmem:[%s232 + $0x74] sm:$0xf]
      %v350 = vld [vmem:[%s232 + $0x78] sm:$0xf]
      %v351 = vld [vmem:[%s232 + $0x7c] sm:$0xf]
      %v352 = vld [vmem:[%s238] sm:$0xf]
      %v353 = vld [vmem:[%s238 + $0x4] sm:$0xf]
      %v354 = vld [vmem:[%s238 + $0x8] sm:$0xf]
      %v355 = vld [vmem:[%s238 + $0xc] sm:$0xf]
      %v356 = vld [vmem:[%s238 + $0x10] sm:$0xf]
      %v357 = vld [vmem:[%s238 + $0x14] sm:$0xf]
      %v358 = vld [vmem:[%s238 + $0x18] sm:$0xf]
      %v359 = vld [vmem:[%s238 + $0x1c] sm:$0xf]
      %v392 = vunpack.c.l.b16 %v320
      %v393 = vunpack.c.l.b16 %v321
      %v394 = vunpack.c.l.b16 %v322
      %v395 = vunpack.c.l.b16 %v323
      %v396 = vunpack.c.l.b16 %v324
      %v397 = vunpack.c.l.b16 %v325
      %v398 = vunpack.c.l.b16 %v326
      %v399 = vunpack.c.l.b16 %v327
      %v400 = vunpack.c.l.b16 %v328
      %v401 = vunpack.c.l.b16 %v329
      %v402 = vunpack.c.l.b16 %v330
      %v403 = vunpack.c.l.b16 %v331
      %v404 = vunpack.c.l.b16 %v332
      %v405 = vunpack.c.l.b16 %v333
      %v406 = vunpack.c.l.b16 %v334
      %v407 = vunpack.c.l.b16 %v335
      %v408 = vunpack.c.l.b16 %v336
      %v409 = vunpack.c.l.b16 %v337
      %v410 = vunpack.c.l.b16 %v338
      %v411 = vunpack.c.l.b16 %v339
      %v412 = vunpack.c.l.b16 %v340
      %v413 = vunpack.c.l.b16 %v341
      %v414 = vunpack.c.l.b16 %v342
      %v415 = vunpack.c.l.b16 %v343
      %v416 = vunpack.c.l.b16 %v344
      %v417 = vunpack.c.l.b16 %v345
      %v418 = vunpack.c.l.b16 %v346
      %v419 = vunpack.c.l.b16 %v347
      %v420 = vunpack.c.l.b16 %v348
      %v421 = vunpack.c.l.b16 %v349
      %v422 = vunpack.c.l.b16 %v350
      %v423 = vunpack.c.l.b16 %v351
      %v424 = vpack.c.b16 %v393, %v392
      %v425 = vpack.c.b16 %v395, %v394
      %v426 = vpack.c.b16 %v397, %v396
      %v427 = vpack.c.b16 %v399, %v398
      %v428 = vpack.c.b16 %v401, %v400
      %v429 = vpack.c.b16 %v403, %v402
      %v430 = vpack.c.b16 %v405, %v404
      %v431 = vpack.c.b16 %v407, %v406
      %v432 = vpack.c.b16 %v409, %v408
      %v433 = vpack.c.b16 %v411, %v410
      %v434 = vpack.c.b16 %v413, %v412
      %v435 = vpack.c.b16 %v415, %v414
      %v436 = vpack.c.b16 %v417, %v416
      %v437 = vpack.c.b16 %v419, %v418
      %v438 = vpack.c.b16 %v421, %v420
      %v439 = vpack.c.b16 %v423, %v422
      %v448 = vunpack.c.l.b16 %v352
      %v449 = vunpack.c.l.b16 %v353
      %v450 = vunpack.c.l.b16 %v354
      %v451 = vunpack.c.l.b16 %v355
      %v452 = vunpack.c.l.b16 %v356
      %v453 = vunpack.c.l.b16 %v357
      %v454 = vunpack.c.l.b16 %v358
      %v455 = vunpack.c.l.b16 %v359
      %v456 = vpack.c.b16 %v449, %v448
      %v457 = vpack.c.b16 %v451, %v450
      %v458 = vpack.c.b16 %v453, %v452
      %v459 = vpack.c.b16 %v455, %v454
      %vm464 = vcmask 523264
      %v466 = vsel %vm464, %v424, 0
      %v469 = vsel %vm464, %v425, 0
      %v472 = vsel %vm464, %v426, 0
      %v475 = vsel %vm464, %v427, 0
      %v478 = vsel %vm464, %v428, 0
      %v481 = vsel %vm464, %v429, 0
      %v484 = vsel %vm464, %v430, 0
      %v487 = vsel %vm464, %v431, 0
      %v490 = vsel %vm464, %v432, 0
      %v493 = vsel %vm464, %v433, 0
      %v496 = vsel %vm464, %v434, 0
      %v499 = vsel %vm464, %v435, 0
      %v502 = vsel %vm464, %v436, 0
      %v505 = vsel %vm464, %v437, 0
      %v508 = vsel %vm464, %v438, 0
      %v511 = vsel %vm464, %v439, 0
      %513 = vmatprep.subr.bf16.mxu0 0
      %514 = vmatpush1.bf16.msra.mxu0 %v456
      %515 = vmatprep.subr.bf16.mxu0 0
      %516 = vmatpush1.bf16.msra.mxu0 %v457
      %517 = vmatprep.subr.bf16.mxu0 0
      %518 = vmatpush1.bf16.msra.mxu0 %v458
      %519 = vmatprep.subr.bf16.mxu0 0
      %520 = vmatpush1.bf16.msra.mxu0 %v459
      %521 = vmatprep.subr.bf16.mxu0 0
      %522 = vmatpush1.bf16.msra.mxu0 0
      %523 = vmatprep.subr.bf16.mxu0 0
      %524 = vmatpush1.bf16.msra.mxu0 0
      %525 = vmatprep.subr.bf16.mxu0 0
      %526 = vmatpush1.bf16.msra.mxu0 0
      %527 = vmatprep.subr.bf16.mxu0 0
      %528 = vmatpush1.bf16.msra.mxu0 0
      %529 = vmatprep.subr.bf16.mxu0 0
      %530 = vmatpush1.bf16.msra.mxu0 0
      %531 = vmatprep.subr.bf16.mxu0 0
      %532 = vmatpush1.bf16.msra.mxu0 0
      %533 = vmatprep.subr.bf16.mxu0 0
      %534 = vmatpush1.bf16.msra.mxu0 0
      %535 = vmatprep.subr.bf16.mxu0 0
      %536 = vmatpush1.bf16.msra.mxu0 0
      %537 = vmatprep.subr.bf16.mxu0 0
      %538 = vmatpush1.bf16.msra.mxu0 0
      %539 = vmatprep.subr.bf16.mxu0 0
      %540 = vmatpush1.bf16.msra.mxu0 0
      %541 = vmatprep.subr.bf16.mxu0 0
      %542 = vmatpush1.bf16.msra.mxu0 0
      %543 = vmatprep.subr.bf16.mxu0 0
      %544 = vmatpush1.bf16.msra.mxu0 0
      %545 = vmatprep.mubr.bf16.mxu0 0
      %546 = vmatmul.mubr.bf16.gmra.mrb[0].mxu0 %v466
      %v547 = vpop.f32.mrb[0].mxu0
      %v548 = vadd.f32 0.0, %v547
      %v549 = vpop.f32.mrb[0].mxu0
      %v550 = vpop.f32.mrb[0].mxu0
      %v551 = vadd.f32 0.0, %v550
      %v552 = vpop.f32.mrb[0].mxu0
      %553 = vmatprep.mubr.bf16.mxu0 0
      %554 = vmatmul.mubr.bf16.gmra.mrb[0].mxu0 %v469
      %v555 = vpop.f32.mrb[0].mxu0
      %v556 = vadd.f32 0.0, %v555
      %v557 = vpop.f32.mrb[0].mxu0
      %v558 = vpop.f32.mrb[0].mxu0
      %v559 = vadd.f32 0.0, %v558
      %v560 = vpop.f32.mrb[0].mxu0
      %561 = vmatprep.mubr.bf16.mxu0 0
      %562 = vmatmul.mubr.bf16.gmra.mrb[0].mxu0 %v472
      %v563 = vpop.f32.mrb[0].mxu0
      %v564 = vadd.f32 0.0, %v563
      %v565 = vpop.f32.mrb[0].mxu0
      %v566 = vpop.f32.mrb[0].mxu0
      %v567 = vadd.f32 0.0, %v566
      %v568 = vpop.f32.mrb[0].mxu0
      %569 = vmatprep.mubr.bf16.mxu0 0
      %570 = vmatmul.mubr.bf16.gmra.mrb[0].mxu0 %v475
      %v571 = vpop.f32.mrb[0].mxu0
      %v572 = vadd.f32 0.0, %v571
      %v573 = vpop.f32.mrb[0].mxu0
      %v574 = vpop.f32.mrb[0].mxu0
      %v575 = vadd.f32 0.0, %v574
      %v576 = vpop.f32.mrb[0].mxu0
      %577 = vmatprep.mubr.bf16.mxu0 0
      %578 = vmatmul.mubr.bf16.gmra.mrb[0].mxu0 %v478
      %v579 = vpop.f32.mrb[0].mxu0
      %v580 = vadd.f32 0.0, %v579
      %v581 = vpop.f32.mrb[0].mxu0
      %v582 = vpop.f32.mrb[0].mxu0
      %v583 = vadd.f32 0.0, %v582
      %v584 = vpop.f32.mrb[0].mxu0
      %585 = vmatprep.mubr.bf16.mxu0 0
      %586 = vmatmul.mubr.bf16.gmra.mrb[0].mxu0 %v481
      %v587 = vpop.f32.mrb[0].mxu0
      %v588 = vadd.f32 0.0, %v587
      %v589 = vpop.f32.mrb[0].mxu0
      %v590 = vpop.f32.mrb[0].mxu0
      %v591 = vadd.f32 0.0, %v590
      %v592 = vpop.f32.mrb[0].mxu0
      %593 = vmatprep.mubr.bf16.mxu0 0
      %594 = vmatmul.mubr.bf16.gmra.mrb[0].mxu0 %v484
      %v595 = vpop.f32.mrb[0].mxu0
      %v596 = vadd.f32 0.0, %v595
      %v597 = vpop.f32.mrb[0].mxu0
      %v598 = vpop.f32.mrb[0].mxu0
      %v599 = vadd.f32 0.0, %v598
      %v600 = vpop.f32.mrb[0].mxu0
      %601 = vmatprep.mubr.bf16.mxu0 0
      %602 = vmatmul.mubr.bf16.gmra.mrb[0].mxu0 %v487
      %v603 = vpop.f32.mrb[0].mxu0
      %v604 = vadd.f32 0.0, %v603
      %v605 = vpop.f32.mrb[0].mxu0
      %v606 = vpop.f32.mrb[0].mxu0
      %v607 = vadd.f32 0.0, %v606
      %v608 = vpop.f32.mrb[0].mxu0
      %609 = vmatprep.mubr.bf16.mxu0 0
      %610 = vmatmul.mubr.bf16.gmra.mrb[0].mxu0 %v490
      %v611 = vpop.f32.mrb[0].mxu0
      %v612 = vadd.f32 0.0, %v611
      %v613 = vpop.f32.mrb[0].mxu0
      %v614 = vpop.f32.mrb[0].mxu0
      %v615 = vadd.f32 0.0, %v614
      %v616 = vpop.f32.mrb[0].mxu0
      %617 = vmatprep.mubr.bf16.mxu0 0
      %618 = vmatmul.mubr.bf16.gmra.mrb[0].mxu0 %v493
      %v619 = vpop.f32.mrb[0].mxu0
      %v620 = vadd.f32 0.0, %v619
      %v621 = vpop.f32.mrb[0].mxu0
      %v622 = vpop.f32.mrb[0].mxu0
      %v623 = vadd.f32 0.0, %v622
      %v624 = vpop.f32.mrb[0].mxu0
      %625 = vmatprep.mubr.bf16.mxu0 0
      %626 = vmatmul.mubr.bf16.gmra.mrb[0].mxu0 %v496
      %v627 = vpop.f32.mrb[0].mxu0
      %v628 = vadd.f32 0.0, %v627
      %v629 = vpop.f32.mrb[0].mxu0
      %v630 = vpop.f32.mrb[0].mxu0
      %v631 = vadd.f32 0.0, %v630
      %v632 = vpop.f32.mrb[0].mxu0
      %633 = vmatprep.mubr.bf16.mxu0 0
      %634 = vmatmul.mubr.bf16.gmra.mrb[0].mxu0 %v499
      %v635 = vpop.f32.mrb[0].mxu0
      %v636 = vadd.f32 0.0, %v635
      %v637 = vpop.f32.mrb[0].mxu0
      %v638 = vpop.f32.mrb[0].mxu0
      %v639 = vadd.f32 0.0, %v638
      %v640 = vpop.f32.mrb[0].mxu0
      %641 = vmatprep.mubr.bf16.mxu0 0
      %642 = vmatmul.mubr.bf16.gmra.mrb[0].mxu0 %v502
      %v643 = vpop.f32.mrb[0].mxu0
      %v644 = vadd.f32 0.0, %v643
      %v645 = vpop.f32.mrb[0].mxu0
      %v646 = vpop.f32.mrb[0].mxu0
      %v647 = vadd.f32 0.0, %v646
      %v648 = vpop.f32.mrb[0].mxu0
      %649 = vmatprep.mubr.bf16.mxu0 0
      %650 = vmatmul.mubr.bf16.gmra.mrb[0].mxu0 %v505
      %v651 = vpop.f32.mrb[0].mxu0
      %v652 = vadd.f32 0.0, %v651
      %v653 = vpop.f32.mrb[0].mxu0
      %v654 = vpop.f32.mrb[0].mxu0
      %v655 = vadd.f32 0.0, %v654
      %v656 = vpop.f32.mrb[0].mxu0
      %657 = vmatprep.mubr.bf16.mxu0 0
      %658 = vmatmul.mubr.bf16.gmra.mrb[0].mxu0 %v508
      %v659 = vpop.f32.mrb[0].mxu0
      %v660 = vadd.f32 0.0, %v659
      %v661 = vpop.f32.mrb[0].mxu0
      %v662 = vpop.f32.mrb[0].mxu0
      %v663 = vadd.f32 0.0, %v662
      %v664 = vpop.f32.mrb[0].mxu0
      %665 = vmatprep.mubr.bf16.mxu0 0
      %666 = vmatmul.mubr.bf16.gmra.mrb[0].mxu0 %v511
      %v667 = vpop.f32.mrb[0].mxu0
      %v668 = vadd.f32 0.0, %v667
      %v669 = vpop.f32.mrb[0].mxu0
      %v670 = vpop.f32.mrb[0].mxu0
      %v671 = vadd.f32 0.0, %v670
      %v672 = vpop.f32.mrb[0].mxu0
      %673 = vdwg.mxu0
      %v674 = vadd.f32 %v288, %v548
      %v675 = vadd.f32 %v289, %v551
      %v676 = vadd.f32 %v290, %v556
      %v677 = vadd.f32 %v291, %v559
      %v678 = vadd.f32 %v292, %v564
      %v679 = vadd.f32 %v293, %v567
      %v680 = vadd.f32 %v294, %v572
      %v681 = vadd.f32 %v295, %v575
      %v682 = vadd.f32 %v296, %v580
      %v683 = vadd.f32 %v297, %v583
      %v684 = vadd.f32 %v298, %v588
      %v685 = vadd.f32 %v299, %v591
      %v686 = vadd.f32 %v300, %v596
      %v687 = vadd.f32 %v301, %v599
      %v688 = vadd.f32 %v302, %v604
      %v689 = vadd.f32 %v303, %v607
      %v690 = vadd.f32 %v304, %v612
      %v691 = vadd.f32 %v305, %v615
      %v692 = vadd.f32 %v306, %v620
      %v693 = vadd.f32 %v307, %v623
      %v694 = vadd.f32 %v308, %v628
      %v695 = vadd.f32 %v309, %v631
      %v696 = vadd.f32 %v310, %v636
      %v697 = vadd.f32 %v311, %v639
      %v698 = vadd.f32 %v312, %v644
      %v699 = vadd.f32 %v313, %v647
      %v700 = vadd.f32 %v314, %v652
      %v701 = vadd.f32 %v315, %v655
      %v702 = vadd.f32 %v316, %v660
      %v703 = vadd.f32 %v317, %v663
      %v704 = vadd.f32 %v318, %v668
      %v705 = vadd.f32 %v319, %v671
      %706 = vst.msk [vmem:[#allocation2] sm:$0xff] %vm464, %v674
      %707 = vst.msk [vmem:[#allocation2 + $0x8] sm:$0xff] %vm464, %v675
      %708 = vst.msk [vmem:[#allocation2 + $0x10] sm:$0xff] %vm464, %v676
      %709 = vst.msk [vmem:[#allocation2 + $0x18] sm:$0xff] %vm464, %v677
      %710 = vst.msk [vmem:[#allocation2 + $0x20] sm:$0xff] %vm464, %v678
      %711 = vst.msk [vmem:[#allocation2 + $0x28] sm:$0xff] %vm464, %v679
      %712 = vst.msk [vmem:[#allocation2 + $0x30] sm:$0xff] %vm464, %v680
      %713 = vst.msk [vmem:[#allocation2 + $0x38] sm:$0xff] %vm464, %v681
      %714 = vst.msk [vmem:[#allocation2 + $0x40] sm:$0xff] %vm464, %v682
      %715 = vst.msk [vmem:[#allocation2 + $0x48] sm:$0xff] %vm464, %v683
      %716 = vst.msk [vmem:[#allocation2 + $0x50] sm:$0xff] %vm464, %v684
      %717 = vst.msk [vmem:[#allocation2 + $0x58] sm:$0xff] %vm464, %v685
      %718 = vst.msk [vmem:[#allocation2 + $0x60] sm:$0xff] %vm464, %v686
      %719 = vst.msk [vmem:[#allocation2 + $0x68] sm:$0xff] %vm464, %v687
      %720 = vst.msk [vmem:[#allocation2 + $0x70] sm:$0xff] %vm464, %v688
      %721 = vst.msk [vmem:[#allocation2 + $0x78] sm:$0xff] %vm464, %v689
      %722 = vst.msk [vmem:[#allocation2 + $0x80] sm:$0xff] %vm464, %v690
      %723 = vst.msk [vmem:[#allocation2 + $0x88] sm:$0xff] %vm464, %v691
      %724 = vst.msk [vmem:[#allocation2 + $0x90] sm:$0xff] %vm464, %v692
      %725 = vst.msk [vmem:[#allocation2 + $0x98] sm:$0xff] %vm464, %v693
      %726 = vst.msk [vmem:[#allocation2 + $0xa0] sm:$0xff] %vm464, %v694
      %727 = vst.msk [vmem:[#allocation2 + $0xa8] sm:$0xff] %vm464, %v695
      %728 = vst.msk [vmem:[#allocation2 + $0xb0] sm:$0xff] %vm464, %v696
      %729 = vst.msk [vmem:[#allocation2 + $0xb8] sm:$0xff] %vm464, %v697
      %730 = vst.msk [vmem:[#allocation2 + $0xc0] sm:$0xff] %vm464, %v698
      %731 = vst.msk [vmem:[#allocation2 + $0xc8] sm:$0xff] %vm464, %v699
      %732 = vst.msk [vmem:[#allocation2 + $0xd0] sm:$0xff] %vm464, %v700
      %733 = vst.msk [vmem:[#allocation2 + $0xd8] sm:$0xff] %vm464, %v701
      %734 = vst.msk [vmem:[#allocation2 + $0xe0] sm:$0xff] %vm464, %v702
      %735 = vst.msk [vmem:[#allocation2 + $0xe8] sm:$0xff] %vm464, %v703
      %736 = vst.msk [vmem:[#allocation2 + $0xf0] sm:$0xff] %vm464, %v704
      %737 = vst.msk [vmem:[#allocation2 + $0xf8] sm:$0xff] %vm464, %v705
      // Predicated region
      $region37: #{tpu_custom_call.1} parent=31 // pred_check
        %p738 = pneg %p251
      $region38: #{tpu_custom_call.1} parent=31 // pred_check_branch
        %740 = sbr.rel (%p738) target = $region40
      $region39: #{tpu_custom_call.1} parent=31 // pred_region
        %v741 = vld [vmem:[#allocation2] sm:$0xff]
        %v742 = vld [vmem:[#allocation2 + $0x8] sm:$0xff]
        %v743 = vld [vmem:[#allocation2 + $0x10] sm:$0xff]
        %v744 = vld [vmem:[#allocation2 + $0x18] sm:$0xff]
        %v745 = vld [vmem:[#allocation2 + $0x20] sm:$0xff]
        %v746 = vld [vmem:[#allocation2 + $0x28] sm:$0xff]
        %v747 = vld [vmem:[#allocation2 + $0x30] sm:$0xff]
        %v748 = vld [vmem:[#allocation2 + $0x38] sm:$0xff]
        %v749 = vld [vmem:[#allocation2 + $0x40] sm:$0xff]
        %v750 = vld [vmem:[#allocation2 + $0x48] sm:$0xff]
        %v751 = vld [vmem:[#allocation2 + $0x50] sm:$0xff]
        %v752 = vld [vmem:[#allocation2 + $0x58] sm:$0xff]
        %v753 = vld [vmem:[#allocation2 + $0x60] sm:$0xff]
        %v754 = vld [vmem:[#allocation2 + $0x68] sm:$0xff]
        %v755 = vld [vmem:[#allocation2 + $0x70] sm:$0xff]
        %v756 = vld [vmem:[#allocation2 + $0x78] sm:$0xff]
        %v757 = vld [vmem:[#allocation2 + $0x80] sm:$0xff]
        %v758 = vld [vmem:[#allocation2 + $0x88] sm:$0xff]
        %v759 = vld [vmem:[#allocation2 + $0x90] sm:$0xff]
        %v760 = vld [vmem:[#allocation2 + $0x98] sm:$0xff]
        %v761 = vld [vmem:[#allocation2 + $0xa0] sm:$0xff]
        %v762 = vld [vmem:[#allocation2 + $0xa8] sm:$0xff]
        %v763 = vld [vmem:[#allocation2 + $0xb0] sm:$0xff]
        %v764 = vld [vmem:[#allocation2 + $0xb8] sm:$0xff]
        %v765 = vld [vmem:[#allocation2 + $0xc0] sm:$0xff]
        %v766 = vld [vmem:[#allocation2 + $0xc8] sm:$0xff]
        %v767 = vld [vmem:[#allocation2 + $0xd0] sm:$0xff]
        %v768 = vld [vmem:[#allocation2 + $0xd8] sm:$0xff]
        %v769 = vld [vmem:[#allocation2 + $0xe0] sm:$0xff]
        %v770 = vld [vmem:[#allocation2 + $0xe8] sm:$0xff]
        %v771 = vld [vmem:[#allocation2 + $0xf0] sm:$0xff]
        %v772 = vld [vmem:[#allocation2 + $0xf8] sm:$0xff]
        %v773 = vld [vmem:[%s2] sm:$0x1]
        %v775 = vlaneseq
        %v776 = vshrl.u32 %v775, 7
        %v777 = vsub.s32 0, %v776
        %v778 = vrot.slane %v773, %v777
        %v780 = vadd.f32 %v741, %v778
        %v781 = vadd.f32 %v742, %v778
        %v782 = vadd.f32 %v743, %v778
        %v783 = vadd.f32 %v744, %v778
        %v784 = vadd.f32 %v745, %v778
        %v785 = vadd.f32 %v746, %v778
        %v786 = vadd.f32 %v747, %v778
        %v787 = vadd.f32 %v748, %v778
        %v788 = vadd.f32 %v749, %v778
        %v789 = vadd.f32 %v750, %v778
        %v790 = vadd.f32 %v751, %v778
        %v791 = vadd.f32 %v752, %v778
        %v792 = vadd.f32 %v753, %v778
        %v793 = vadd.f32 %v754, %v778
        %v794 = vadd.f32 %v755, %v778
        %v795 = vadd.f32 %v756, %v778
        %v796 = vadd.f32 %v757, %v778
        %v797 = vadd.f32 %v758, %v778
        %v798 = vadd.f32 %v759, %v778
        %v799 = vadd.f32 %v760, %v778
        %v800 = vadd.f32 %v761, %v778
        %v801 = vadd.f32 %v762, %v778
        %v802 = vadd.f32 %v763, %v778
        %v803 = vadd.f32 %v764, %v778
        %v804 = vadd.f32 %v765, %v778
        %v805 = vadd.f32 %v766, %v778
        %v806 = vadd.f32 %v767, %v778
        %v807 = vadd.f32 %v768, %v778
        %v808 = vadd.f32 %v769, %v778
        %v809 = vadd.f32 %v770, %v778
        %v810 = vadd.f32 %v771, %v778
        %v811 = vadd.f32 %v772, %v778
        %v812 = vmul.f32 %v780, 0.2
        %v813 = vmul.f32 %v781, 0.2
        %v814 = vmul.f32 %v782, 0.2
        %v815 = vmul.f32 %v783, 0.2
        %v816 = vmul.f32 %v784, 0.2
        %v817 = vmul.f32 %v785, 0.2
        %v818 = vmul.f32 %v786, 0.2
        %v819 = vmul.f32 %v787, 0.2
        %v820 = vmul.f32 %v788, 0.2
        %v821 = vmul.f32 %v789, 0.2
        %v822 = vmul.f32 %v790, 0.2
        %v823 = vmul.f32 %v791, 0.2
        %v824 = vmul.f32 %v792, 0.2
        %v825 = vmul.f32 %v793, 0.2
        %v826 = vmul.f32 %v794, 0.2
        %v827 = vmul.f32 %v795, 0.2
        %v828 = vmul.f32 %v796, 0.2
        %v829 = vmul.f32 %v797, 0.2
        %v830 = vmul.f32 %v798, 0.2
        %v831 = vmul.f32 %v799, 0.2
        %v832 = vmul.f32 %v800, 0.2
        %v833 = vmul.f32 %v801, 0.2
        %v834 = vmul.f32 %v802, 0.2
        %v835 = vmul.f32 %v803, 0.2
        %v836 = vmul.f32 %v804, 0.2
        %v837 = vmul.f32 %v805, 0.2
        %v838 = vmul.f32 %v806, 0.2
        %v839 = vmul.f32 %v807, 0.2
        %v840 = vmul.f32 %v808, 0.2
        %v841 = vmul.f32 %v809, 0.2
        %v842 = vmul.f32 %v810, 0.2
        %v843 = vmul.f32 %v811, 0.2
        %v844 = vmax.f32 %v780, %v812
        %v845 = vmax.f32 %v781, %v813
        %v846 = vmax.f32 %v782, %v814
        %v847 = vmax.f32 %v783, %v815
        %v848 = vmax.f32 %v784, %v816
        %v849 = vmax.f32 %v785, %v817
        %v850 = vmax.f32 %v786, %v818
        %v851 = vmax.f32 %v787, %v819
        %v852 = vmax.f32 %v788, %v820
        %v853 = vmax.f32 %v789, %v821
        %v854 = vmax.f32 %v790, %v822
        %v855 = vmax.f32 %v791, %v823
        %v856 = vmax.f32 %v792, %v824
        %v857 = vmax.f32 %v793, %v825
        %v858 = vmax.f32 %v794, %v826
        %v859 = vmax.f32 %v795, %v827
        %v860 = vmax.f32 %v796, %v828
        %v861 = vmax.f32 %v797, %v829
        %v862 = vmax.f32 %v798, %v830
        %v863 = vmax.f32 %v799, %v831
        %v864 = vmax.f32 %v800, %v832
        %v865 = vmax.f32 %v801, %v833
        %v866 = vmax.f32 %v802, %v834
        %v867 = vmax.f32 %v803, %v835
        %v868 = vmax.f32 %v804, %v836
        %v869 = vmax.f32 %v805, %v837
        %v870 = vmax.f32 %v806, %v838
        %v871 = vmax.f32 %v807, %v839
        %v872 = vmax.f32 %v808, %v840
        %v873 = vmax.f32 %v809, %v841
        %v874 = vmax.f32 %v810, %v842
        %v875 = vmax.f32 %v811, %v843
        %v876 = vpack.c.bf16 %v845, %v844
        %v877 = vpack.c.bf16 %v847, %v846
        %v878 = vpack.c.bf16 %v849, %v848
        %v879 = vpack.c.bf16 %v851, %v850
        %v880 = vpack.c.bf16 %v853, %v852
        %v881 = vpack.c.bf16 %v855, %v854
        %v882 = vpack.c.bf16 %v857, %v856
        %v883 = vpack.c.bf16 %v859, %v858
        %v884 = vpack.c.bf16 %v861, %v860
        %v885 = vpack.c.bf16 %v863, %v862
        %v886 = vpack.c.bf16 %v865, %v864
        %v887 = vpack.c.bf16 %v867, %v866
        %v888 = vpack.c.bf16 %v869, %v868
        %v889 = vpack.c.bf16 %v871, %v870
        %v890 = vpack.c.bf16 %v873, %v872
        %v891 = vpack.c.bf16 %v875, %v874
        %v908 = vunpack.c.l.b16 %v876
        %v909 = vunpack.c.h.b16 %v876
        %v910 = vunpack.c.l.b16 %v877
        %v911 = vunpack.c.h.b16 %v877
        %v912 = vunpack.c.l.b16 %v878
        %v913 = vunpack.c.h.b16 %v878
        %v914 = vunpack.c.l.b16 %v879
        %v915 = vunpack.c.h.b16 %v879
        %v916 = vunpack.c.l.b16 %v880
        %v917 = vunpack.c.h.b16 %v880
        %v918 = vunpack.c.l.b16 %v881
        %v919 = vunpack.c.h.b16 %v881
        %v920 = vunpack.c.l.b16 %v882
        %v921 = vunpack.c.h.b16 %v882
        %v922 = vunpack.c.l.b16 %v883
        %v923 = vunpack.c.h.b16 %v883
        %v924 = vunpack.c.l.b16 %v884
        %v925 = vunpack.c.h.b16 %v884
        %v926 = vunpack.c.l.b16 %v885
        %v927 = vunpack.c.h.b16 %v885
        %v928 = vunpack.c.l.b16 %v886
        %v929 = vunpack.c.h.b16 %v886
        %v930 = vunpack.c.l.b16 %v887
        %v931 = vunpack.c.h.b16 %v887
        %v932 = vunpack.c.l.b16 %v888
        %v933 = vunpack.c.h.b16 %v888
        %v934 = vunpack.c.l.b16 %v889
        %v935 = vunpack.c.h.b16 %v889
        %v936 = vunpack.c.l.b16 %v890
        %v937 = vunpack.c.h.b16 %v890
        %v938 = vunpack.c.l.b16 %v891
        %v939 = vunpack.c.h.b16 %v891
        %v940 = vpack.c.b16 %v908, %v908
        %v941 = vpack.c.b16 %v909, %v909
        %v942 = vpack.c.b16 %v910, %v910
        %v943 = vpack.c.b16 %v911, %v911
        %v944 = vpack.c.b16 %v912, %v912
        %v945 = vpack.c.b16 %v913, %v913
        %v946 = vpack.c.b16 %v914, %v914
        %v947 = vpack.c.b16 %v915, %v915
        %v948 = vpack.c.b16 %v916, %v916
        %v949 = vpack.c.b16 %v917, %v917
        %v950 = vpack.c.b16 %v918, %v918
        %v951 = vpack.c.b16 %v919, %v919
        %v952 = vpack.c.b16 %v920, %v920
        %v953 = vpack.c.b16 %v921, %v921
        %v954 = vpack.c.b16 %v922, %v922
        %v955 = vpack.c.b16 %v923, %v923
        %v956 = vpack.c.b16 %v924, %v924
        %v957 = vpack.c.b16 %v925, %v925
        %v958 = vpack.c.b16 %v926, %v926
        %v959 = vpack.c.b16 %v927, %v927
        %v960 = vpack.c.b16 %v928, %v928
        %v961 = vpack.c.b16 %v929, %v929
        %v962 = vpack.c.b16 %v930, %v930
        %v963 = vpack.c.b16 %v931, %v931
        %v964 = vpack.c.b16 %v932, %v932
        %v965 = vpack.c.b16 %v933, %v933
        %v966 = vpack.c.b16 %v934, %v934
        %v967 = vpack.c.b16 %v935, %v935
        %v968 = vpack.c.b16 %v936, %v936
        %v969 = vpack.c.b16 %v937, %v937
        %v970 = vpack.c.b16 %v938, %v938
        %v971 = vpack.c.b16 %v939, %v939
        %vm1004 = vcmask 519168
        %1005 = vst.msk [vmem:[%s248] sm:$0xf] %vm1004, %v940
        %1006 = vst.msk [vmem:[%s248 + $0x4] sm:$0xf] %vm1004, %v941
        %1007 = vst.msk [vmem:[%s248 + $0x8] sm:$0xf] %vm1004, %v942
        %1008 = vst.msk [vmem:[%s248 + $0xc] sm:$0xf] %vm1004, %v943
        %1009 = vst.msk [vmem:[%s248 + $0x10] sm:$0xf] %vm1004, %v944
        %1010 = vst.msk [vmem:[%s248 + $0x14] sm:$0xf] %vm1004, %v945
        %1011 = vst.msk [vmem:[%s248 + $0x18] sm:$0xf] %vm1004, %v946
        %1012 = vst.msk [vmem:[%s248 + $0x1c] sm:$0xf] %vm1004, %v947
        %1013 = vst.msk [vmem:[%s248 + $0x20] sm:$0xf] %vm1004, %v948
        %1014 = vst.msk [vmem:[%s248 + $0x24] sm:$0xf] %vm1004, %v949
        %1015 = vst.msk [vmem:[%s248 + $0x28] sm:$0xf] %vm1004, %v950
        %1016 = vst.msk [vmem:[%s248 + $0x2c] sm:$0xf] %vm1004, %v951
        %1017 = vst.msk [vmem:[%s248 + $0x30] sm:$0xf] %vm1004, %v952
        %1018 = vst.msk [vmem:[%s248 + $0x34] sm:$0xf] %vm1004, %v953
        %1019 = vst.msk [vmem:[%s248 + $0x38] sm:$0xf] %vm1004, %v954
        %1020 = vst.msk [vmem:[%s248 + $0x3c] sm:$0xf] %vm1004, %v955
        %1021 = vst.msk [vmem:[%s248 + $0x40] sm:$0xf] %vm1004, %v956
        %1022 = vst.msk [vmem:[%s248 + $0x44] sm:$0xf] %vm1004, %v957
        %1023 = vst.msk [vmem:[%s248 + $0x48] sm:$0xf] %vm1004, %v958
        %1024 = vst.msk [vmem:[%s248 + $0x4c] sm:$0xf] %vm1004, %v959
        %1025 = vst.msk [vmem:[%s248 + $0x50] sm:$0xf] %vm1004, %v960
        %1026 = vst.msk [vmem:[%s248 + $0x54] sm:$0xf] %vm1004, %v961
        %1027 = vst.msk [vmem:[%s248 + $0x58] sm:$0xf] %vm1004, %v962
        %1028 = vst.msk [vmem:[%s248 + $0x5c] sm:$0xf] %vm1004, %v963
        %1029 = vst.msk [vmem:[%s248 + $0x60] sm:$0xf] %vm1004, %v964
        %1030 = vst.msk [vmem:[%s248 + $0x64] sm:$0xf] %vm1004, %v965
        %1031 = vst.msk [vmem:[%s248 + $0x68] sm:$0xf] %vm1004, %v966
        %1032 = vst.msk [vmem:[%s248 + $0x6c] sm:$0xf] %vm1004, %v967
        %1033 = vst.msk [vmem:[%s248 + $0x70] sm:$0xf] %vm1004, %v968
        %1034 = vst.msk [vmem:[%s248 + $0x74] sm:$0xf] %vm1004, %v969
        %1035 = vst.msk [vmem:[%s248 + $0x78] sm:$0xf] %vm1004, %v970
        %1036 = vst.msk [vmem:[%s248 + $0x7c] sm:$0xf] %vm1004, %v971
      $region40: #{tpu_custom_call.1} parent=31 // pred_fallthru
        _
      %s1037 = smul.u32 32, %s20
      %p1038 = scmp.lt.s32.totalorder %s19, 1
      %s1039 = scalar_select %p1038, %s19, 1
      %p1040 = scmp.lt.s32.totalorder %s1037, 31
      %s1041 = scalar_select %p1040, %s1037, 31
      %s1042 = smul.addr %s1039, 32
      %s1043 = sadd.s32 %s1041, %s1042
      %s1044 = smul.addr %s1043, 4
      %s1045 = scalar_lea.vmem %s3, %s1044
      // Predicated region
      $region41: #{tpu_custom_call.1} parent=31 // pred_check
        %p1046 = pneg %p130
      $region42: #{tpu_custom_call.1} parent=31 // pred_check_branch
        %1048 = sbr.rel (%p1046) target = $region44
      $region43: #{tpu_custom_call.1} parent=31 // pred_region
        %s1049 = smul.u32 32, %s20
      $region44: #{tpu_custom_call.1} parent=31 // pred_fallthru
        _
    $region32: #{tpu_custom_call.1} parent=5 // pred_fallthru
      _
    %p1050 = scmp.le.s32.totalorder 2, %s9
    // Predicated region
    $region45: #{tpu_custom_call.1} parent=5 // pred_check
      %p1051 = pneg %p1050
    $region46: #{tpu_custom_call.1} parent=5 // pred_check_branch
      %1053 = sbr.rel (%p1051) target = $region48
    $region47: #{tpu_custom_call.1} parent=5 // pred_region
      %s1054 = ssub.s32 %s9, 2
      // Predicated region
      $region49: #{tpu_custom_call.1} parent=47 // pred_check
        %p1055 = pneg %p136
      $region50: #{tpu_custom_call.1} parent=47 // pred_check_branch
        %1057 = sbr.rel (%p1055) target = $region52
      $region51: #{tpu_custom_call.1} parent=47 // pred_region
        %s1058 = smul.u32 32, %s23
        %p1059 = scmp.lt.s32.totalorder %s22, 1
        %s1060 = scalar_select %p1059, %s22, 1
        %p1061 = scmp.lt.s32.totalorder %s1058, 31
        %s1062 = scalar_select %p1061, %s1058, 31
        %s1063 = smul.addr %s1060, 32
        %s1064 = sadd.s32 %s1062, %s1063
        %s1065 = smul.addr %s1064, 4
        %s1066 = scalar_lea.vmem %s3, %s1065
      $region52: #{tpu_custom_call.1} parent=47 // pred_fallthru
        _
    $region48: #{tpu_custom_call.1} parent=5 // pred_fallthru
      _
  $region6: #{tpu_custom_call.1} parent=0 // loop_footer
    %s13 = sadd.s32 1, %s9
  $region7: #{tpu_custom_call.1} parent=0 // loop_footer_branch
    %8 = sbr.rel target = $region3
  $region8: #{tpu_custom_call.1} parent=0 // loop_exit
    _

</llo_original>
